<compile_context>
chip_gen: v5e
topology: v5e:2x2
jax: 0.10.0
libtpu: 0.0.40
codegen_flags: <defaults>
</compile_context>

<pallas_src>
import functools
import math

import jax
import jax.numpy as jnp
from jax.experimental import pallas as pl
from jax.experimental.pallas import tpu as pltpu


def _round_up(a: int, b: int) -> int:
    return (a + b - 1) // b * b


def _pick_hidden_chunk(hidden: int) -> int:
    """Largest 128-aligned chunk (<= 2048) that divides the hidden dim.

    Falls back to the full hidden dim when nothing divides cleanly (chunking is
    then skipped, which is always correct).
    """
    if hidden <= 2048:
        return hidden
    for th in (2048, 1536, 1280, 1024, 768, 640, 512, 384, 256, 128):
        if hidden % th == 0:
            return th
    return hidden


def _vmem_capacity_bytes() -> int:
    try:
        return int(pltpu.get_tpu_info().vmem_capacity_bytes)
    except Exception:
        return 64 << 20  # conservative (v7x per-core VMEM)


def _gelu(h, use_tanh):
    if use_tanh:
        # tanh-approx GELU: tanh runs on the EUP (separate bundle slot).
        return jax.nn.gelu(h, approximate=True)
    # Exact GELU (PyTorch nn.GELU default, approximate='none').
    return 0.5 * h * (1.0 + jax.lax.erf(h * (1.0 / math.sqrt(2.0))))


def mlp_kernel(x_ref, w1_ref, b1_ref, w2_ref, b2_ref, o_ref, acc_ref, *,
               hidden_chunk, use_tanh_gelu):
    cd = w1_ref.dtype                     # MXU input dtype == weight dtype
    x = x_ref[...].astype(cd)             # in-kernel cast; no wrapper HBM pass
    hidden = w1_ref.shape[1]
    n_chunks = hidden // hidden_chunk

    for hk in range(n_chunks):            # static unrolled loop over H chunks
        lo = hk * hidden_chunk
        hi = lo + hidden_chunk
        # fc1 chunk: (tm, D_in) @ (D_in, tH), f32 accumulation on the MXU.
        h = jnp.dot(x, w1_ref[:, lo:hi], preferred_element_type=jnp.float32)
        h = h + b1_ref[:, lo:hi].astype(jnp.float32)
        h = _gelu(h, use_tanh_gelu)
        # fc2 partial product: (tm, tH) @ (tH, D_out), accumulated in f32.
        p = jnp.dot(h.astype(cd), w2_ref[lo:hi, :],
                    preferred_element_type=jnp.float32)
        if hk == 0:
            acc_ref[...] = p
        else:
            acc_ref[...] += p

    y = acc_ref[...] + b2_ref[...].astype(jnp.float32)
    o_ref[...] = y.astype(o_ref.dtype)


def mlp_pallas(x, w1, b1, w2, b2, *, tm=None, use_tanh_gelu=False):
    """ViT MLP forward: y = GELU(x @ w1 + b1) @ w2 + b2.

    x : (B, N, D_in) activations (any float dtype; kept in HBM as-is).
    w1: (D_in, H), b1: (H,)      -- fc1 weight pre-transposed (in, out).
    w2: (H, D_out), b2: (D_out,) -- fc2 weight pre-transposed (in, out).
    The MXU input dtype follows w1.dtype: pass bf16 weights (cast once at init)
    for the fast path, f32 weights for exact parity.
    """
    orig_dtype = x.dtype
    B, N, D_in = x.shape
    H = w1.shape[1]
    D_out = w2.shape[1]
    M = B * N

    compute_dtype = w1.dtype
    w_bytes = jnp.dtype(compute_dtype).itemsize
    x_bytes = jnp.dtype(x.dtype).itemsize
    o_bytes = jnp.dtype(orig_dtype).itemsize
    b_bytes = jnp.dtype(b1.dtype).itemsize

    vmem_cap = _vmem_capacity_bytes()
    vmem_cap_usable = int(vmem_cap * 0.88)   # headroom for compiler scratch

    if tm is None:
        # 512-row tiles on 128 MiB-VMEM parts (v5e/v6e) halve grid-step count;
        # stay at 256 on v7x (64 MiB VMEM).
        tm = 512 if vmem_cap >= (96 << 20) else 256

    # bf16 tiles pack 16 sublanes per vreg; align token tile accordingly.
    align = 16 if w_bytes < 4 else 8
    tm_eff = max(align, min(tm, _round_up(M, align)))
    num_m = pl.cdiv(M, tm_eff)

    th = _pick_hidden_chunk(H)

    x2 = x.reshape(M, D_in)          # contiguous flatten: no data movement under jit
    b1_2 = b1.reshape(1, H)
    b2_2 = b2.reshape(1, D_out)

    kernel = functools.partial(mlp_kernel, hidden_chunk=th,
                               use_tanh_gelu=use_tanh_gelu)

    cost = pl.CostEstimate(
        flops=int(2 * M * D_in * H + 2 * M * H * D_out),
        transcendentals=int(M * H),
        bytes_accessed=int(M * D_in * x_bytes
                           + (D_in * H + H * D_out) * w_bytes
                           + (H + D_out) * b_bytes
                           + M * D_out * o_bytes),
    )

    # With a 1-3 step grid a megacore split only duplicates the resident-weight
    # HBM reads; keep it on one core in that regime.
    sem = ("parallel",) if num_m >= 4 else ("arbitrary",)

    def build(weight_buffers):
        wmode = ({"pipeline_mode": pl.Buffered(1)} if weight_buffers == 1 else {})
        vmem_need = int(
            weight_buffers * (D_in * H + H * D_out) * w_bytes   # resident weights
            + weight_buffers * (H + D_out) * b_bytes            # resident biases
            + 2 * tm_eff * D_in * x_bytes                       # x tile double buffer
            + 2 * tm_eff * D_out * o_bytes                      # out tile double buffer
            + tm_eff * D_out * 4                                # f32 accumulator scratch
            + tm_eff * th * (4 + w_bytes)                       # f32 h chunk + narrow copy
            + tm_eff * D_in * w_bytes                           # casted x copy
            + (4 << 20))                                        # headroom
        return pl.pallas_call(
            kernel,
            out_shape=jax.ShapeDtypeStruct((M, D_out), orig_dtype),
            grid_spec=pltpu.PrefetchScalarGridSpec(
                num_scalar_prefetch=0,
                grid=(num_m,),
                in_specs=[
                    pl.BlockSpec((tm_eff, D_in), lambda i: (i, 0)),      # x (streamed)
                    pl.BlockSpec((D_in, H), lambda i: (0, 0), **wmode),  # w1 (resident)
                    pl.BlockSpec((1, H), lambda i: (0, 0), **wmode),     # b1
                    pl.BlockSpec((H, D_out), lambda i: (0, 0), **wmode), # w2 (resident)
                    pl.BlockSpec((1, D_out), lambda i: (0, 0), **wmode), # b2
                ],
                out_specs=pl.BlockSpec((tm_eff, D_out), lambda i: (i, 0)),
                scratch_shapes=[pltpu.VMEM((tm_eff, D_out), jnp.float32)],
            ),
            compiler_params=pltpu.CompilerParams(
                dimension_semantics=sem,
                vmem_limit_bytes=min(vmem_need, vmem_cap_usable),
            ),
            cost_estimate=cost,
        )

    args = (x2, w1, b1_2, w2, b2_2)
    try:
        # Preferred: single-buffered resident weights (halves weight VMEM).
        out2 = build(weight_buffers=1)(*args)
    except Exception:
        # Portability guard: fall back to default (double) buffering if this
        # jax build rejects pipeline_mode=pl.Buffered(1).
        out2 = build(weight_buffers=2)(*args)

    return out2.reshape(B, N, D_out)


def reference_mlp(x, w1, b1, w2, b2):
    h = jnp.einsum("bnd,dh->bnh", x, w1) + b1
    h = 0.5 * h * (1.0 + jax.lax.erf(h / math.sqrt(2.0)))
    return jnp.einsum("bnh,ho->bno", h, w2) + b2


if __name__ == "__main__":
    # Small ViT-like shapes: batch=2, seq=8, in_features=32, hidden=64, out=32
    B, N, D_in, H = 2, 8, 32, 64
    D_out = D_in

    key = jax.random.PRNGKey(0)
    kx, kw1, kb1, kw2, kb2 = jax.random.split(key, 5)

    x = jax.random.normal(kx, (B, N, D_in), dtype=jnp.float32)
    bound1 = 1.0 / math.sqrt(D_in)
    bound2 = 1.0 / math.sqrt(H)
    w1 = jax.random.uniform(kw1, (D_in, H), jnp.float32, -bound1, bound1)
    b1 = jax.random.uniform(kb1, (H,), jnp.float32, -bound1, bound1)
    w2 = jax.random.uniform(kw2, (H, D_out), jnp.float32, -bound2, bound2)
    b2 = jax.random.uniform(kb2, (D_out,), jnp.float32, -bound2, bound2)

    ref = reference_mlp(x, w1, b1, w2, b2)

    # (1) f32 parity path: exact-erf GELU, f32 MXU inputs — tight check.
    out_f32 = jax.block_until_ready(mlp_pallas(x, w1, b1, w2, b2))
    assert out_f32.shape == (B, N, D_out)
    assert jnp.allclose(out_f32, ref, atol=1e-5, rtol=1e-5), \
        float(jnp.max(jnp.abs(out_f32 - ref)))

    # (2) Performance path: weights pre-cast to bf16 ONCE outside the call
    #     (review: no per-call weight convert pass); activations cast in-kernel.
    w1_bf, w2_bf = w1.astype(jnp.bfloat16), w2.astype(jnp.bfloat16)
    out_bf = jax.block_until_ready(mlp_pallas(x, w1_bf, b1, w2_bf, b2))
    assert out_bf.shape == (B, N, D_out)
    assert jnp.allclose(out_bf, ref, atol=5e-2, rtol=5e-2)

    # (3) tanh-approx GELU option (EUP path for v6e/v7x) — loose check.
    out_tanh = jax.block_until_ready(
        mlp_pallas(x, w1_bf, b1, w2_bf, b2, use_tanh_gelu=True))
    assert jnp.allclose(out_tanh, ref, atol=5e-2, rtol=5e-2)

    # (4) Ragged token count + multi-step grid: no wrapper-side padding needed.
    xr = jax.random.normal(kx, (B, 12, D_in), dtype=jnp.float32)
    ref_r = reference_mlp(xr, w1, b1, w2, b2)
    out_r = jax.block_until_ready(mlp_pallas(xr, w1, b1, w2, b2, tm=16))
    assert out_r.shape == (B, 12, D_out)
    assert jnp.allclose(out_r, ref_r, atol=1e-5, rtol=1e-5), \
        float(jnp.max(jnp.abs(out_r - ref_r)))

    print("KERNEL_OK")
</pallas_src>

<mosaic_0001>
module attributes {stable_mosaic.version = 11 : i64} {
  func.func @mlp_kernel(%arg0: i32, %arg1: memref<16x32xf32, #tpu.memory_space<vmem>>, %arg2: memref<32x64xf32, #tpu.memory_space<vmem>>, %arg3: memref<1x64xf32, #tpu.memory_space<vmem>>, %arg4: memref<64x32xf32, #tpu.memory_space<vmem>>, %arg5: memref<1x32xf32, #tpu.memory_space<vmem>>, %arg6: memref<16x32xf32, #tpu.memory_space<vmem>>, %arg7: memref<16x32xf32, #tpu.memory_space<vmem>>) attributes {dimension_semantics = [#tpu.dimension_semantics<arbitrary>], iteration_bounds = array<i64: 1>, scalar_prefetch = 0 : i64, scratch_operands = 1 : i64, tpu.core_type = #tpu.core_type<tc>, window_params = [{transform_indices = @transform_0, window_bounds = array<i64: 16, 32>}, {pipeline_mode = #tpu.pipeline_mode<synchronous>, transform_indices = @transform_1, window_bounds = array<i64: 32, 64>}, {pipeline_mode = #tpu.pipeline_mode<synchronous>, transform_indices = @transform_2, window_bounds = array<i64: 1, 64>}, {pipeline_mode = #tpu.pipeline_mode<synchronous>, transform_indices = @transform_3, window_bounds = array<i64: 64, 32>}, {pipeline_mode = #tpu.pipeline_mode<synchronous>, transform_indices = @transform_4, window_bounds = array<i64: 1, 32>}, {transform_indices = @transform_5, window_bounds = array<i64: 16, 32>}]} {
    %c0 = arith.constant 0 : index
    %c0_0 = arith.constant 0 : index
    %0 = vector.load %arg1[%c0, %c0_0] : memref<16x32xf32, #tpu.memory_space<vmem>>, vector<16x32xf32>
    %c0_1 = arith.constant 0 : index
    %c0_2 = arith.constant 0 : index
    %1 = vector.load %arg2[%c0_1, %c0_2] : memref<32x64xf32, #tpu.memory_space<vmem>>, vector<32x64xf32>
    %cst = arith.constant dense<0.000000e+00> : vector<16x64xf32>
    %2 = tpu.matmul %0, %1, %cst {dimension_numbers = #tpu.dot_dimension_numbers<[1], [0], [0], [1], [0, 0, 1, 1], [], []>} : vector<16x32xf32>, vector<32x64xf32>, vector<16x64xf32> -> vector<16x64xf32>
    %c0_3 = arith.constant 0 : index
    %c0_4 = arith.constant 0 : index
    %3 = vector.load %arg3[%c0_3, %c0_4] : memref<1x64xf32, #tpu.memory_space<vmem>>, vector<1x64xf32>
    %4 = vector.broadcast %3 : vector<1x64xf32> to vector<16x64xf32>
    %5 = arith.addf %2, %4 : vector<16x64xf32>
    %cst_5 = arith.constant 5.000000e-01 : f32
    %6 = vector.broadcast %cst_5 : f32 to vector<16x64xf32>
    %7 = arith.mulf %6, %5 : vector<16x64xf32>
    %cst_6 = arith.constant 0.707106769 : f32
    %8 = vector.broadcast %cst_6 : f32 to vector<16x64xf32>
    %9 = arith.mulf %5, %8 : vector<16x64xf32>
    %10 = math.erf %9 : vector<16x64xf32>
    %cst_7 = arith.constant 1.000000e+00 : f32
    %11 = vector.broadcast %cst_7 : f32 to vector<16x64xf32>
    %12 = arith.addf %11, %10 : vector<16x64xf32>
    %13 = arith.mulf %7, %12 : vector<16x64xf32>
    %c0_8 = arith.constant 0 : index
    %c0_9 = arith.constant 0 : index
    %14 = vector.load %arg4[%c0_8, %c0_9] : memref<64x32xf32, #tpu.memory_space<vmem>>, vector<64x32xf32>
    %cst_10 = arith.constant dense<0.000000e+00> : vector<16x32xf32>
    %15 = tpu.matmul %13, %14, %cst_10 {dimension_numbers = #tpu.dot_dimension_numbers<[1], [0], [0], [1], [0, 0, 1, 1], [], []>} : vector<16x64xf32>, vector<64x32xf32>, vector<16x32xf32> -> vector<16x32xf32>
    %c0_11 = arith.constant 0 : index
    %c0_12 = arith.constant 0 : index
    %16 = vector.load %arg7[%c0_11, %c0_12] : memref<16x32xf32, #tpu.memory_space<vmem>>, vector<16x32xf32>
    tpu.vector_store %arg7[%c0_11, %c0_12], %15 {strides = array<i32>} : memref<16x32xf32, #tpu.memory_space<vmem>>, vector<16x32xf32>,
    %c0_13 = arith.constant 0 : index
    %c0_14 = arith.constant 0 : index
    %17 = vector.load %arg7[%c0_13, %c0_14] : memref<16x32xf32, #tpu.memory_space<vmem>>, vector<16x32xf32>
    %c0_15 = arith.constant 0 : index
    %c0_16 = arith.constant 0 : index
    %18 = vector.load %arg5[%c0_15, %c0_16] : memref<1x32xf32, #tpu.memory_space<vmem>>, vector<1x32xf32>
    %19 = vector.broadcast %18 : vector<1x32xf32> to vector<16x32xf32>
    %20 = arith.addf %17, %19 : vector<16x32xf32>
    %c0_17 = arith.constant 0 : index
    %c0_18 = arith.constant 0 : index
    %21 = vector.load %arg6[%c0_17, %c0_18] : memref<16x32xf32, #tpu.memory_space<vmem>>, vector<16x32xf32>
    tpu.vector_store %arg6[%c0_17, %c0_18], %20 {strides = array<i32>} : memref<16x32xf32, #tpu.memory_space<vmem>>, vector<16x32xf32>,
    return
  }
  func.func @transform_0(%arg0: i32) -> (i32, i32) {
    %c0_i32 = arith.constant 0 : i32
    %c0_i32_0 = arith.constant 0 : i32
    return %arg0, %c0_i32 : i32, i32
  }
  func.func @transform_1(%arg0: i32) -> (i32, i32) {
    %c0_i32 = arith.constant 0 : i32
    %c0_i32_0 = arith.constant 0 : i32
    %c0_i32_1 = arith.constant 0 : i32
    return %c0_i32, %c0_i32_0 : i32, i32
  }
  func.func @transform_2(%arg0: i32) -> (i32, i32) {
    %c0_i32 = arith.constant 0 : i32
    %c0_i32_0 = arith.constant 0 : i32
    %c0_i32_1 = arith.constant 0 : i32
    return %c0_i32, %c0_i32_0 : i32, i32
  }
  func.func @transform_3(%arg0: i32) -> (i32, i32) {
    %c0_i32 = arith.constant 0 : i32
    %c0_i32_0 = arith.constant 0 : i32
    %c0_i32_1 = arith.constant 0 : i32
    return %c0_i32, %c0_i32_0 : i32, i32
  }
  func.func @transform_4(%arg0: i32) -> (i32, i32) {
    %c0_i32 = arith.constant 0 : i32
    %c0_i32_0 = arith.constant 0 : i32
    %c0_i32_1 = arith.constant 0 : i32
    return %c0_i32, %c0_i32_0 : i32, i32
  }
  func.func @transform_5(%arg0: i32) -> (i32, i32) {
    %c0_i32 = arith.constant 0 : i32
    %c0_i32_0 = arith.constant 0 : i32
    return %arg0, %c0_i32 : i32, i32
  }
}

module attributes {stable_mosaic.version = 11 : i64} {
  func.func @mlp_kernel(%arg0: i32, %arg1: memref<16x32xf32, #tpu.memory_space<vmem>>, %arg2: memref<32x64xf32, #tpu.memory_space<vmem>>, %arg3: memref<1x64xf32, #tpu.memory_space<vmem>>, %arg4: memref<64x32xf32, #tpu.memory_space<vmem>>, %arg5: memref<1x32xf32, #tpu.memory_space<vmem>>, %arg6: memref<16x32xf32, #tpu.memory_space<vmem>>, %arg7: memref<16x32xf32, #tpu.memory_space<vmem>>) attributes {dimension_semantics = [#tpu.dimension_semantics<arbitrary>], iteration_bounds = array<i64: 1>, scalar_prefetch = 0 : i64, scratch_operands = 1 : i64, tpu.core_type = #tpu.core_type<tc>, window_params = [{transform_indices = @transform_0, window_bounds = array<i64: 16, 32>}, {pipeline_mode = #tpu.pipeline_mode<synchronous>, transform_indices = @transform_1, window_bounds = array<i64: 32, 64>}, {pipeline_mode = #tpu.pipeline_mode<synchronous>, transform_indices = @transform_2, window_bounds = array<i64: 1, 64>}, {pipeline_mode = #tpu.pipeline_mode<synchronous>, transform_indices = @transform_3, window_bounds = array<i64: 64, 32>}, {pipeline_mode = #tpu.pipeline_mode<synchronous>, transform_indices = @transform_4, window_bounds = array<i64: 1, 32>}, {transform_indices = @transform_5, window_bounds = array<i64: 16, 32>}]} {
    %c0 = arith.constant 0 : index
    %c0_0 = arith.constant 0 : index
    %0 = vector.load %arg1[%c0, %c0_0] : memref<16x32xf32, #tpu.memory_space<vmem>>, vector<16x32xf32>
    %c0_1 = arith.constant 0 : index
    %c0_2 = arith.constant 0 : index
    %1 = vector.load %arg2[%c0_1, %c0_2] : memref<32x64xf32, #tpu.memory_space<vmem>>, vector<32x64xf32>
    %cst = arith.constant dense<0.000000e+00> : vector<16x64xf32>
    %2 = tpu.matmul %0, %1, %cst {dimension_numbers = #tpu.dot_dimension_numbers<[1], [0], [0], [1], [0, 0, 1, 1], [], []>} : vector<16x32xf32>, vector<32x64xf32>, vector<16x64xf32> -> vector<16x64xf32>
    %c0_3 = arith.constant 0 : index
    %c0_4 = arith.constant 0 : index
    %3 = vector.load %arg3[%c0_3, %c0_4] : memref<1x64xf32, #tpu.memory_space<vmem>>, vector<1x64xf32>
    %4 = vector.broadcast %3 : vector<1x64xf32> to vector<16x64xf32>
    %5 = arith.addf %2, %4 : vector<16x64xf32>
    %cst_5 = arith.constant 5.000000e-01 : f32
    %6 = vector.broadcast %cst_5 : f32 to vector<16x64xf32>
    %7 = arith.mulf %6, %5 : vector<16x64xf32>
    %cst_6 = arith.constant 0.707106769 : f32
    %8 = vector.broadcast %cst_6 : f32 to vector<16x64xf32>
    %9 = arith.mulf %5, %8 : vector<16x64xf32>
    %10 = math.erf %9 : vector<16x64xf32>
    %cst_7 = arith.constant 1.000000e+00 : f32
    %11 = vector.broadcast %cst_7 : f32 to vector<16x64xf32>
    %12 = arith.addf %11, %10 : vector<16x64xf32>
    %13 = arith.mulf %7, %12 : vector<16x64xf32>
    %c0_8 = arith.constant 0 : index
    %c0_9 = arith.constant 0 : index
    %14 = vector.load %arg4[%c0_8, %c0_9] : memref<64x32xf32, #tpu.memory_space<vmem>>, vector<64x32xf32>
    %cst_10 = arith.constant dense<0.000000e+00> : vector<16x32xf32>
    %15 = tpu.matmul %13, %14, %cst_10 {dimension_numbers = #tpu.dot_dimension_numbers<[1], [0], [0], [1], [0, 0, 1, 1], [], []>} : vector<16x64xf32>, vector<64x32xf32>, vector<16x32xf32> -> vector<16x32xf32>
    %c0_11 = arith.constant 0 : index
    %c0_12 = arith.constant 0 : index
    %16 = vector.load %arg7[%c0_11, %c0_12] : memref<16x32xf32, #tpu.memory_space<vmem>>, vector<16x32xf32>
    tpu.vector_store %arg7[%c0_11, %c0_12], %15 {strides = array<i32>} : memref<16x32xf32, #tpu.memory_space<vmem>>, vector<16x32xf32>,
    %c0_13 = arith.constant 0 : index
    %c0_14 = arith.constant 0 : index
    %17 = vector.load %arg7[%c0_13, %c0_14] : memref<16x32xf32, #tpu.memory_space<vmem>>, vector<16x32xf32>
    %c0_15 = arith.constant 0 : index
    %c0_16 = arith.constant 0 : index
    %18 = vector.load %arg5[%c0_15, %c0_16] : memref<1x32xf32, #tpu.memory_space<vmem>>, vector<1x32xf32>
    %19 = vector.broadcast %18 : vector<1x32xf32> to vector<16x32xf32>
    %20 = arith.addf %17, %19 : vector<16x32xf32>
    %c0_17 = arith.constant 0 : index
    %c0_18 = arith.constant 0 : index
    %21 = vector.load %arg6[%c0_17, %c0_18] : memref<16x32xf32, #tpu.memory_space<vmem>>, vector<16x32xf32>
    tpu.vector_store %arg6[%c0_17, %c0_18], %20 {strides = array<i32>} : memref<16x32xf32, #tpu.memory_space<vmem>>, vector<16x32xf32>,
    return
  }
  func.func @transform_0(%arg0: i32) -> (i32, i32) {
    %c0_i32 = arith.constant 0 : i32
    %c0_i32_0 = arith.constant 0 : i32
    return %arg0, %c0_i32 : i32, i32
  }
  func.func @transform_1(%arg0: i32) -> (i32, i32) {
    %c0_i32 = arith.constant 0 : i32
    %c0_i32_0 = arith.constant 0 : i32
    %c0_i32_1 = arith.constant 0 : i32
    return %c0_i32, %c0_i32_0 : i32, i32
  }
  func.func @transform_2(%arg0: i32) -> (i32, i32) {
    %c0_i32 = arith.constant 0 : i32
    %c0_i32_0 = arith.constant 0 : i32
    %c0_i32_1 = arith.constant 0 : i32
    return %c0_i32, %c0_i32_0 : i32, i32
  }
  func.func @transform_3(%arg0: i32) -> (i32, i32) {
    %c0_i32 = arith.constant 0 : i32
    %c0_i32_0 = arith.constant 0 : i32
    %c0_i32_1 = arith.constant 0 : i32
    return %c0_i32, %c0_i32_0 : i32, i32
  }
  func.func @transform_4(%arg0: i32) -> (i32, i32) {
    %c0_i32 = arith.constant 0 : i32
    %c0_i32_0 = arith.constant 0 : i32
    %c0_i32_1 = arith.constant 0 : i32
    return %c0_i32, %c0_i32_0 : i32, i32
  }
  func.func @transform_5(%arg0: i32) -> (i32, i32) {
    %c0_i32 = arith.constant 0 : i32
    %c0_i32_0 = arith.constant 0 : i32
    return %arg0, %c0_i32 : i32, i32
  }
}

</mosaic_0001>

<llo_original>
// kernel: tpu_custom_call.1
$region0: #{tpu_custom_call.1}
  #allocation0 [shape = 'u32[]', space=smem, size = 0x4, offset = 0x4, fixed_abs, tag = 'smem constant byte address 0x4 - core index']
  #allocation1 [shape = 'u32[72,128]{1,0:T(1,128)}', space=vmem, size = 0x9000, scoped, tag = 'internal scratch']
  #allocation2 [shape = 'f32[16,32]{1,0:T(8,128)}', space=vmem, size = 0x2000, scoped, tag = 'scratch operand']
  %s0 = inlined_call_operand.vmem [shape: f32[16,32], index: 0, kind: input, shape index: {}]
  %s1 = inlined_call_operand.vmem [shape: f32[32,64], index: 1, kind: input, shape index: {}]
  %s2 = inlined_call_operand.vmem [shape: f32[1,64], index: 2, kind: input, shape index: {}]
  %s3 = inlined_call_operand.vmem [shape: f32[64,32], index: 3, kind: input, shape index: {}]
  %s4 = inlined_call_operand.vmem [shape: f32[1,32], index: 4, kind: input, shape index: {}]
  %s5 = inlined_call_operand.hbm [shape: f32[16,32], index: 5, kind: output, shape index: {}]
  %s6 = sld [smem:[#allocation0]]
  $region30: #{tpu_custom_call.1} parent=0
    _
  %s8 = ssub.s32 1, %s6
  %s9 = scalar_select 0, %s8, %s6
  $region1: #{tpu_custom_call.1} parent=0
    #allocation3 [shape = 'u8[8192]{0}', space=vmem, size = 0x2000, scoped, tag = 'output window, operand 0, single buffered']
    #allocation4 [shape = 's32[1]{0}', space=sflag, size = 0x4, scoped, tag = 'scoped memory for tpu_custom_call.1']
    %10 = vsyncpa [#allocation4], 0
    // Predicated region
    $region2: #{tpu_custom_call.1} parent=1 // pred_check
      _
    $region3: #{tpu_custom_call.1} parent=1 // pred_check_branch
      %12 = sbr.rel (0) target = $region5
    $region4: #{tpu_custom_call.1} parent=1 // pred_region
      _
    $region5: #{tpu_custom_call.1} parent=1 // pred_fallthru
      _
    // Predicated region
    $region6: #{tpu_custom_call.1} parent=1 // pred_check
      _
    $region7: #{tpu_custom_call.1} parent=1 // pred_check_branch
      %14 = sbr.rel (0) target = $region9
    $region8: #{tpu_custom_call.1} parent=1 // pred_region
      _
    $region9: #{tpu_custom_call.1} parent=1 // pred_fallthru
      _
    // Predicated region
    $region10: #{tpu_custom_call.1} parent=1 // pred_check
      _
    $region11: #{tpu_custom_call.1} parent=1 // pred_check_branch
      %16 = sbr.rel (0) target = $region13
    $region12: #{tpu_custom_call.1} parent=1 // pred_region
      _
    $region13: #{tpu_custom_call.1} parent=1 // pred_fallthru
      _
    // Predicated region
    $region14: #{tpu_custom_call.1} parent=1 // pred_check
      _
    $region15: #{tpu_custom_call.1} parent=1 // pred_check_branch
      %18 = sbr.rel (0) target = $region17
    $region16: #{tpu_custom_call.1} parent=1 // pred_region
      _
    $region17: #{tpu_custom_call.1} parent=1 // pred_fallthru
      _
    // Predicated region
    $region18: #{tpu_custom_call.1} parent=1 // pred_check
      _
    $region19: #{tpu_custom_call.1} parent=1 // pred_check_branch
      %20 = sbr.rel (0) target = $region21
    $region20: #{tpu_custom_call.1} parent=1 // pred_region
      _
    $region21: #{tpu_custom_call.1} parent=1 // pred_fallthru
      _
    %v21 = vld [vmem:[%s0] sm:$0xff]
    %v22 = vld [vmem:[%s0 + $0x8] sm:$0xff]
    %v23 = vld [vmem:[%s1] sm:$0xff]
    %v24 = vld [vmem:[%s1 + $0x8] sm:$0xff]
    %v25 = vld [vmem:[%s1 + $0x10] sm:$0xff]
    %v26 = vld [vmem:[%s1 + $0x18] sm:$0xff]
    %v27 = vld [vmem:[%s2] sm:$0x1]
    %v29 = vperm.slane %v27, 0
    %vm31 = vcmask 261120
    %v33 = vsel %vm31, %v21, 0
    %v36 = vsel %vm31, %v22, 0
    %38 = vmatpush.msra.mxu0 0.0
    %39 = vmatpush.msra.mxu0 0.0
    %40 = vmatpush.msra.mxu0 0.0
    %41 = vmatpush.msra.mxu0 0.0
    %42 = vmatpush.msra.mxu0 0.0
    %43 = vmatpush.msra.mxu0 0.0
    %44 = vmatpush.msra.mxu0 0.0
    %45 = vmatpush.msra.mxu0 0.0
    %46 = vmatpush.msra.mxu0 0.0
    %47 = vmatpush.msra.mxu0 0.0
    %48 = vmatpush.msra.mxu0 0.0
    %49 = vmatpush.msra.mxu0 0.0
    %50 = vmatpush.msra.mxu0 %v26
    %51 = vmatpush.msra.mxu0 %v25
    %52 = vmatpush.msra.mxu0 %v24
    %53 = vmatpush.msra.mxu0 %v23
    %54 = vmatmul.f32.gmra.mxu0 %v33
    %v55 = vpop.f32.mrf.mxu0
    %v56 = vadd.f32 %v29, %v55
    %57 = vmatmul.f32.gmra.mxu0 %v36
    %v58 = vpop.f32.mrf.mxu0
    %v59 = vadd.f32 %v29, %v58
    %60 = vdwg.mxu0
    %v61 = vmul.f32 %v56, 0.5
    %v62 = vmul.f32 %v59, 0.5
    %v63 = vmul.f32 %v56, 0.70710677
    %v64 = vmul.f32 %v59, 0.70710677
    %v65 = vmul.f32 %v63, %v63
    %v66 = vmin.f32 16.0, %v65
    %v67 = vmul.f32 %v66, 2.1237322e-06
    %v68 = vadd.f32 %v67, 0.00028619796
    %v69 = vmul.f32 %v66, %v68
    %v70 = vadd.f32 %v69, 0.0036580483
    %v71 = vmul.f32 %v66, %v70
    %v72 = vadd.f32 %v71, 0.05243302
    %v73 = vmul.f32 %v66, %v72
    %v74 = vadd.f32 %v73, 0.18741608
    %v75 = vmul.f32 %v66, %v74
    %v76 = vadd.f32 %v75, 1.1283791
    %v77 = vmul.f32 %v63, %v76
    %v78 = vmul.f32 %v66, 3.8918573e-05
    %v79 = vadd.f32 %v78, 0.001143296
    %v80 = vmul.f32 %v66, %v79
    %v81 = vadd.f32 %v80, 0.014752088
    %v82 = vmul.f32 %v66, %v81
    %v83 = vadd.f32 %v82, 0.112945676
    %v84 = vmul.f32 %v66, %v83
    %v85 = vadd.f32 %v84, 0.4994258
    %v86 = vmul.f32 %v66, %v85
    %v87 = vadd.f32 %v86, 1.0
    %v88 = vrcp.pop %v87
    %v89 = vmul.f32 %v87, %v88
    %v90 = vsub.f32 1.0, %v89
    %v91 = vmul.f32 %v88, %v90
    %v92 = vadd.f32 %v88, %v91
    %vm93 = vweird.f32 %v87
    %vm94 = vweird.f32 %v88
    %vm95 = vmor %vm93, %vm94
    %v96 = vsel %vm95, %v88, %v92
    %v97 = vand.u32 2147483647, %v87
    %vm98 = vcmp.eq.f32.partialorder %v97, 8.507059e+37
    %v99 = vand.u32 %v87, 2147483648
    %v100 = vor.u32 1.1754944e-38, %v99
    %v101 = vsel %vm98, %v100, %v96
    %v102 = vmul.f32 %v77, %v101
    %v103 = vmin.f32 %v102, 1.0
    %v104 = vmax.f32 %v103, -1.0
    %v105 = vmul.f32 %v64, %v64
    %v106 = vmin.f32 16.0, %v105
    %v107 = vmul.f32 %v106, 2.1237322e-06
    %v108 = vadd.f32 %v107, 0.00028619796
    %v109 = vmul.f32 %v106, %v108
    %v110 = vadd.f32 %v109, 0.0036580483
    %v111 = vmul.f32 %v106, %v110
    %v112 = vadd.f32 %v111, 0.05243302
    %v113 = vmul.f32 %v106, %v112
    %v114 = vadd.f32 %v113, 0.18741608
    %v115 = vmul.f32 %v106, %v114
    %v116 = vadd.f32 %v115, 1.1283791
    %v117 = vmul.f32 %v64, %v116
    %v118 = vmul.f32 %v106, 3.8918573e-05
    %v119 = vadd.f32 %v118, 0.001143296
    %v120 = vmul.f32 %v106, %v119
    %v121 = vadd.f32 %v120, 0.014752088
    %v122 = vmul.f32 %v106, %v121
    %v123 = vadd.f32 %v122, 0.112945676
    %v124 = vmul.f32 %v106, %v123
    %v125 = vadd.f32 %v124, 0.4994258
    %v126 = vmul.f32 %v106, %v125
    %v127 = vadd.f32 %v126, 1.0
    %v128 = vrcp.pop %v127
    %v129 = vmul.f32 %v127, %v128
    %v130 = vsub.f32 1.0, %v129
    %v131 = vmul.f32 %v128, %v130
    %v132 = vadd.f32 %v128, %v131
    %vm133 = vweird.f32 %v127
    %vm134 = vweird.f32 %v128
    %vm135 = vmor %vm133, %vm134
    %v136 = vsel %vm135, %v128, %v132
    %v137 = vand.u32 2147483647, %v127
    %vm138 = vcmp.eq.f32.partialorder %v137, 8.507059e+37
    %v139 = vand.u32 %v127, 2147483648
    %v140 = vor.u32 1.1754944e-38, %v139
    %v141 = vsel %vm138, %v140, %v136
    %v142 = vmul.f32 %v117, %v141
    %v143 = vmin.f32 %v142, 1.0
    %v144 = vmax.f32 %v143, -1.0
    %v145 = vadd.f32 %v104, 1.0
    %v146 = vadd.f32 %v144, 1.0
    %v147 = vmul.f32 %v61, %v145
    %v148 = vmul.f32 %v62, %v146
    %v149 = vld [vmem:[%s3] sm:$0xff]
    %v150 = vld [vmem:[%s3 + $0x8] sm:$0xff]
    %v151 = vld [vmem:[%s3 + $0x10] sm:$0xff]
    %v152 = vld [vmem:[%s3 + $0x18] sm:$0xff]
    %v153 = vld [vmem:[%s3 + $0x20] sm:$0xff]
    %v154 = vld [vmem:[%s3 + $0x28] sm:$0xff]
    %v155 = vld [vmem:[%s3 + $0x30] sm:$0xff]
    %v156 = vld [vmem:[%s3 + $0x38] sm:$0xff]
    %vm157 = vcmask 523264
    %v159 = vsel %vm157, %v147, 0
    %v162 = vsel %vm157, %v148, 0
    %164 = vmatpush.msra.mxu0 0.0
    %165 = vmatpush.msra.mxu0 0.0
    %166 = vmatpush.msra.mxu0 0.0
    %167 = vmatpush.msra.mxu0 0.0
    %168 = vmatpush.msra.mxu0 0.0
    %169 = vmatpush.msra.mxu0 0.0
    %170 = vmatpush.msra.mxu0 0.0
    %171 = vmatpush.msra.mxu0 0.0
    %172 = vmatpush.msra.mxu0 %v156
    %173 = vmatpush.msra.mxu0 %v155
    %174 = vmatpush.msra.mxu0 %v154
    %175 = vmatpush.msra.mxu0 %v153
    %176 = vmatpush.msra.mxu0 %v152
    %177 = vmatpush.msra.mxu0 %v151
    %178 = vmatpush.msra.mxu0 %v150
    %179 = vmatpush.msra.mxu0 %v149
    %180 = vmatmul.f32.gmra.mxu0 %v159
    %v181 = vpop.f32.mrf.mxu0
    %v182 = vadd.f32 0.0, %v181
    %183 = vmatmul.f32.gmra.mxu0 %v162
    %v184 = vpop.f32.mrf.mxu0
    %v185 = vadd.f32 0.0, %v184
    %186 = vdwg.mxu0
    %187 = vst.msk [vmem:[#allocation2] sm:$0xff] %vm31, %v182
    %188 = vst.msk [vmem:[#allocation2 + $0x8] sm:$0xff] %vm31, %v185
    %v189 = vld [vmem:[#allocation2] sm:$0xff]
    %v190 = vld [vmem:[#allocation2 + $0x8] sm:$0xff]
    %v191 = vld [vmem:[%s4] sm:$0x1]
    %v193 = vperm.slane %v191, 0
    %v195 = vadd.f32 %v189, %v193
    %v196 = vadd.f32 %v190, %v193
    %197 = vst.msk [vmem:[#allocation3] sm:$0xff] %vm31, %v195
    %198 = vst.msk [vmem:[#allocation3 + $0x8] sm:$0xff] %vm31, %v196
    // Predicated region
    $region22: #{tpu_custom_call.1} parent=1 // pred_check
      _
    $region23: #{tpu_custom_call.1} parent=1 // pred_check_branch
      %200 = sbr.rel (0) target = $region25
    $region24: #{tpu_custom_call.1} parent=1 // pred_region
      %202 = vsyncadd [#allocation4], 0
      %s203 = sshll.u32 [#allocation3], 4
      %s204 = int_to_ptr.vmem [resolvable:$true] %s203
      %s205 = sshll.u32 %s5, 4
      %s206 = int_to_ptr.hbm [resolvable:$true] %s205
      %211 = dma.vmem_to_hbm [thread:$0]  %s204, 256, %s206, [#allocation4], 128, 128, 8
    $region25: #{tpu_custom_call.1} parent=1 // pred_fallthru
      _
    // Predicated region
    $region26: #{tpu_custom_call.1} parent=1 // pred_check
      _
    $region27: #{tpu_custom_call.1} parent=1 // pred_check_branch
      %213 = sbr.rel (0) target = $region29
    $region28: #{tpu_custom_call.1} parent=1 // pred_region
      %215 = dma.done [#allocation4], 256
    $region29: #{tpu_custom_call.1} parent=1 // pred_fallthru
      _
    %216 = vsyncpa [#allocation4], 1

// kernel: tpu_custom_call.1
$region0: #{tpu_custom_call.1}
  #allocation0 [shape = 'u32[]', space=smem, size = 0x4, offset = 0x4, fixed_abs, tag = 'smem constant byte address 0x4 - core index']
  #allocation1 [shape = 'u32[72,128]{1,0:T(1,128)}', space=vmem, size = 0x9000, scoped, tag = 'internal scratch']
  #allocation2 [shape = 'f32[16,32]{1,0:T(8,128)}', space=vmem, size = 0x2000, scoped, tag = 'scratch operand']
  %s0 = inlined_call_operand.vmem [shape: f32[16,32], index: 0, kind: input, shape index: {}]
  %s1 = inlined_call_operand.vmem [shape: f32[32,64], index: 1, kind: input, shape index: {}]
  %s2 = inlined_call_operand.vmem [shape: f32[1,64], index: 2, kind: input, shape index: {}]
  %s3 = inlined_call_operand.vmem [shape: f32[64,32], index: 3, kind: input, shape index: {}]
  %s4 = inlined_call_operand.vmem [shape: f32[1,32], index: 4, kind: input, shape index: {}]
  %s5 = inlined_call_operand.hbm [shape: f32[16,32], index: 5, kind: output, shape index: {}]
  %s6 = sld [smem:[#allocation0]]
  $region30: #{tpu_custom_call.1} parent=0
    _
  %s8 = ssub.s32 1, %s6
  %s9 = scalar_select 0, %s8, %s6
  $region1: #{tpu_custom_call.1} parent=0
    #allocation3 [shape = 'u8[8192]{0}', space=vmem, size = 0x2000, scoped, tag = 'output window, operand 0, single buffered']
    #allocation4 [shape = 's32[1]{0}', space=sflag, size = 0x4, scoped, tag = 'scoped memory for tpu_custom_call.1']
    %10 = vsyncpa [#allocation4], 0
    // Predicated region
    $region2: #{tpu_custom_call.1} parent=1 // pred_check
      _
    $region3: #{tpu_custom_call.1} parent=1 // pred_check_branch
      %12 = sbr.rel (0) target = $region5
    $region4: #{tpu_custom_call.1} parent=1 // pred_region
      _
    $region5: #{tpu_custom_call.1} parent=1 // pred_fallthru
      _
    // Predicated region
    $region6: #{tpu_custom_call.1} parent=1 // pred_check
      _
    $region7: #{tpu_custom_call.1} parent=1 // pred_check_branch
      %14 = sbr.rel (0) target = $region9
    $region8: #{tpu_custom_call.1} parent=1 // pred_region
      _
    $region9: #{tpu_custom_call.1} parent=1 // pred_fallthru
      _
    // Predicated region
    $region10: #{tpu_custom_call.1} parent=1 // pred_check
      _
    $region11: #{tpu_custom_call.1} parent=1 // pred_check_branch
      %16 = sbr.rel (0) target = $region13
    $region12: #{tpu_custom_call.1} parent=1 // pred_region
      _
    $region13: #{tpu_custom_call.1} parent=1 // pred_fallthru
      _
    // Predicated region
    $region14: #{tpu_custom_call.1} parent=1 // pred_check
      _
    $region15: #{tpu_custom_call.1} parent=1 // pred_check_branch
      %18 = sbr.rel (0) target = $region17
    $region16: #{tpu_custom_call.1} parent=1 // pred_region
      _
    $region17: #{tpu_custom_call.1} parent=1 // pred_fallthru
      _
    // Predicated region
    $region18: #{tpu_custom_call.1} parent=1 // pred_check
      _
    $region19: #{tpu_custom_call.1} parent=1 // pred_check_branch
      %20 = sbr.rel (0) target = $region21
    $region20: #{tpu_custom_call.1} parent=1 // pred_region
      _
    $region21: #{tpu_custom_call.1} parent=1 // pred_fallthru
      _
    %v21 = vld [vmem:[%s0] sm:$0xff]
    %v22 = vld [vmem:[%s0 + $0x8] sm:$0xff]
    %v23 = vld [vmem:[%s1] sm:$0xff]
    %v24 = vld [vmem:[%s1 + $0x8] sm:$0xff]
    %v25 = vld [vmem:[%s1 + $0x10] sm:$0xff]
    %v26 = vld [vmem:[%s1 + $0x18] sm:$0xff]
    %v27 = vld [vmem:[%s2] sm:$0x1]
    %v29 = vperm.slane %v27, 0
    %vm31 = vcmask 261120
    %v33 = vsel %vm31, %v21, 0
    %v36 = vsel %vm31, %v22, 0
    %38 = vmatpush.msra.mxu0 0.0
    %39 = vmatpush.msra.mxu0 0.0
    %40 = vmatpush.msra.mxu0 0.0
    %41 = vmatpush.msra.mxu0 0.0
    %42 = vmatpush.msra.mxu0 0.0
    %43 = vmatpush.msra.mxu0 0.0
    %44 = vmatpush.msra.mxu0 0.0
    %45 = vmatpush.msra.mxu0 0.0
    %46 = vmatpush.msra.mxu0 0.0
    %47 = vmatpush.msra.mxu0 0.0
    %48 = vmatpush.msra.mxu0 0.0
    %49 = vmatpush.msra.mxu0 0.0
    %50 = vmatpush.msra.mxu0 %v26
    %51 = vmatpush.msra.mxu0 %v25
    %52 = vmatpush.msra.mxu0 %v24
    %53 = vmatpush.msra.mxu0 %v23
    %54 = vmatmul.f32.gmra.mxu0 %v33
    %v55 = vpop.f32.mrf.mxu0
    %v56 = vadd.f32 %v29, %v55
    %57 = vmatmul.f32.gmra.mxu0 %v36
    %v58 = vpop.f32.mrf.mxu0
    %v59 = vadd.f32 %v29, %v58
    %60 = vdwg.mxu0
    %v61 = vmul.f32 %v56, 0.5
    %v62 = vmul.f32 %v59, 0.5
    %v63 = vmul.f32 %v56, 0.70710677
    %v64 = vmul.f32 %v59, 0.70710677
    %v65 = vmul.f32 %v63, %v63
    %v66 = vmin.f32 16.0, %v65
    %v67 = vmul.f32 %v66, 2.1237322e-06
    %v68 = vadd.f32 %v67, 0.00028619796
    %v69 = vmul.f32 %v66, %v68
    %v70 = vadd.f32 %v69, 0.0036580483
    %v71 = vmul.f32 %v66, %v70
    %v72 = vadd.f32 %v71, 0.05243302
    %v73 = vmul.f32 %v66, %v72
    %v74 = vadd.f32 %v73, 0.18741608
    %v75 = vmul.f32 %v66, %v74
    %v76 = vadd.f32 %v75, 1.1283791
    %v77 = vmul.f32 %v63, %v76
    %v78 = vmul.f32 %v66, 3.8918573e-05
    %v79 = vadd.f32 %v78, 0.001143296
    %v80 = vmul.f32 %v66, %v79
    %v81 = vadd.f32 %v80, 0.014752088
    %v82 = vmul.f32 %v66, %v81
    %v83 = vadd.f32 %v82, 0.112945676
    %v84 = vmul.f32 %v66, %v83
    %v85 = vadd.f32 %v84, 0.4994258
    %v86 = vmul.f32 %v66, %v85
    %v87 = vadd.f32 %v86, 1.0
    %v88 = vrcp.pop %v87
    %v89 = vmul.f32 %v87, %v88
    %v90 = vsub.f32 1.0, %v89
    %v91 = vmul.f32 %v88, %v90
    %v92 = vadd.f32 %v88, %v91
    %vm93 = vweird.f32 %v87
    %vm94 = vweird.f32 %v88
    %vm95 = vmor %vm93, %vm94
    %v96 = vsel %vm95, %v88, %v92
    %v97 = vand.u32 2147483647, %v87
    %vm98 = vcmp.eq.f32.partialorder %v97, 8.507059e+37
    %v99 = vand.u32 %v87, 2147483648
    %v100 = vor.u32 1.1754944e-38, %v99
    %v101 = vsel %vm98, %v100, %v96
    %v102 = vmul.f32 %v77, %v101
    %v103 = vmin.f32 %v102, 1.0
    %v104 = vmax.f32 %v103, -1.0
    %v105 = vmul.f32 %v64, %v64
    %v106 = vmin.f32 16.0, %v105
    %v107 = vmul.f32 %v106, 2.1237322e-06
    %v108 = vadd.f32 %v107, 0.00028619796
    %v109 = vmul.f32 %v106, %v108
    %v110 = vadd.f32 %v109, 0.0036580483
    %v111 = vmul.f32 %v106, %v110
    %v112 = vadd.f32 %v111, 0.05243302
    %v113 = vmul.f32 %v106, %v112
    %v114 = vadd.f32 %v113, 0.18741608
    %v115 = vmul.f32 %v106, %v114
    %v116 = vadd.f32 %v115, 1.1283791
    %v117 = vmul.f32 %v64, %v116
    %v118 = vmul.f32 %v106, 3.8918573e-05
    %v119 = vadd.f32 %v118, 0.001143296
    %v120 = vmul.f32 %v106, %v119
    %v121 = vadd.f32 %v120, 0.014752088
    %v122 = vmul.f32 %v106, %v121
    %v123 = vadd.f32 %v122, 0.112945676
    %v124 = vmul.f32 %v106, %v123
    %v125 = vadd.f32 %v124, 0.4994258
    %v126 = vmul.f32 %v106, %v125
    %v127 = vadd.f32 %v126, 1.0
    %v128 = vrcp.pop %v127
    %v129 = vmul.f32 %v127, %v128
    %v130 = vsub.f32 1.0, %v129
    %v131 = vmul.f32 %v128, %v130
    %v132 = vadd.f32 %v128, %v131
    %vm133 = vweird.f32 %v127
    %vm134 = vweird.f32 %v128
    %vm135 = vmor %vm133, %vm134
    %v136 = vsel %vm135, %v128, %v132
    %v137 = vand.u32 2147483647, %v127
    %vm138 = vcmp.eq.f32.partialorder %v137, 8.507059e+37
    %v139 = vand.u32 %v127, 2147483648
    %v140 = vor.u32 1.1754944e-38, %v139
    %v141 = vsel %vm138, %v140, %v136
    %v142 = vmul.f32 %v117, %v141
    %v143 = vmin.f32 %v142, 1.0
    %v144 = vmax.f32 %v143, -1.0
    %v145 = vadd.f32 %v104, 1.0
    %v146 = vadd.f32 %v144, 1.0
    %v147 = vmul.f32 %v61, %v145
    %v148 = vmul.f32 %v62, %v146
    %v149 = vld [vmem:[%s3] sm:$0xff]
    %v150 = vld [vmem:[%s3 + $0x8] sm:$0xff]
    %v151 = vld [vmem:[%s3 + $0x10] sm:$0xff]
    %v152 = vld [vmem:[%s3 + $0x18] sm:$0xff]
    %v153 = vld [vmem:[%s3 + $0x20] sm:$0xff]
    %v154 = vld [vmem:[%s3 + $0x28] sm:$0xff]
    %v155 = vld [vmem:[%s3 + $0x30] sm:$0xff]
    %v156 = vld [vmem:[%s3 + $0x38] sm:$0xff]
    %vm157 = vcmask 523264
    %v159 = vsel %vm157, %v147, 0
    %v162 = vsel %vm157, %v148, 0
    %164 = vmatpush.msra.mxu0 0.0
    %165 = vmatpush.msra.mxu0 0.0
    %166 = vmatpush.msra.mxu0 0.0
    %167 = vmatpush.msra.mxu0 0.0
    %168 = vmatpush.msra.mxu0 0.0
    %169 = vmatpush.msra.mxu0 0.0
    %170 = vmatpush.msra.mxu0 0.0
    %171 = vmatpush.msra.mxu0 0.0
    %172 = vmatpush.msra.mxu0 %v156
    %173 = vmatpush.msra.mxu0 %v155
    %174 = vmatpush.msra.mxu0 %v154
    %175 = vmatpush.msra.mxu0 %v153
    %176 = vmatpush.msra.mxu0 %v152
    %177 = vmatpush.msra.mxu0 %v151
    %178 = vmatpush.msra.mxu0 %v150
    %179 = vmatpush.msra.mxu0 %v149
    %180 = vmatmul.f32.gmra.mxu0 %v159
    %v181 = vpop.f32.mrf.mxu0
    %v182 = vadd.f32 0.0, %v181
    %183 = vmatmul.f32.gmra.mxu0 %v162
    %v184 = vpop.f32.mrf.mxu0
    %v185 = vadd.f32 0.0, %v184
    %186 = vdwg.mxu0
    %187 = vst.msk [vmem:[#allocation2] sm:$0xff] %vm31, %v182
    %188 = vst.msk [vmem:[#allocation2 + $0x8] sm:$0xff] %vm31, %v185
    %v189 = vld [vmem:[#allocation2] sm:$0xff]
    %v190 = vld [vmem:[#allocation2 + $0x8] sm:$0xff]
    %v191 = vld [vmem:[%s4] sm:$0x1]
    %v193 = vperm.slane %v191, 0
    %v195 = vadd.f32 %v189, %v193
    %v196 = vadd.f32 %v190, %v193
    %197 = vst.msk [vmem:[#allocation3] sm:$0xff] %vm31, %v195
    %198 = vst.msk [vmem:[#allocation3 + $0x8] sm:$0xff] %vm31, %v196
    // Predicated region
    $region22: #{tpu_custom_call.1} parent=1 // pred_check
      _
    $region23: #{tpu_custom_call.1} parent=1 // pred_check_branch
      %200 = sbr.rel (0) target = $region25
    $region24: #{tpu_custom_call.1} parent=1 // pred_region
      %202 = vsyncadd [#allocation4], 0
      %s203 = sshll.u32 [#allocation3], 4
      %s204 = int_to_ptr.vmem [resolvable:$true] %s203
      %s205 = sshll.u32 %s5, 4
      %s206 = int_to_ptr.hbm [resolvable:$true] %s205
      %211 = dma.vmem_to_hbm [thread:$0]  %s204, 256, %s206, [#allocation4], 128, 128, 8
    $region25: #{tpu_custom_call.1} parent=1 // pred_fallthru
      _
    // Predicated region
    $region26: #{tpu_custom_call.1} parent=1 // pred_check
      _
    $region27: #{tpu_custom_call.1} parent=1 // pred_check_branch
      %213 = sbr.rel (0) target = $region29
    $region28: #{tpu_custom_call.1} parent=1 // pred_region
      %215 = dma.done [#allocation4], 256
    $region29: #{tpu_custom_call.1} parent=1 // pred_fallthru
      _
    %216 = vsyncpa [#allocation4], 1

</llo_original>
